<compile_context>
chip_gen: v5e
topology: v5e:2x2
jax: 0.10.0
libtpu: 0.0.40
codegen_flags: <defaults>
</compile_context>

<pallas_src>
import jax
import jax.numpy as jnp
from jax.experimental import pallas as pl
from jax.experimental.pallas import tpu as pltpu


def _mlp_kernel(x_ref, w1_ref, b1_ref, w2_ref, b2_ref, o_ref):
    # In-kernel cast to bf16 (VPU, hidden under the DMA) -> MXU with f32 acc.
    x = x_ref[...].astype(jnp.bfloat16)
    h = jnp.dot(x, w1_ref[...], preferred_element_type=jnp.float32)
    # Bias + ReLU in f32 (b1 is [1, H] -> broadcasts over rows).
    h = jnp.maximum(h + b1_ref[...], 0.0)
    # Second layer: downcast hidden for the MXU, accumulate in f32.
    o = jnp.dot(h.astype(jnp.bfloat16), w2_ref[...],
                preferred_element_type=jnp.float32)
    o_ref[...] = (o + b2_ref[...]).astype(o_ref.dtype)   # b2 is [1, OUT]


def aspect_classifier_forward(x, w1, b1, w2, b2, *, tile_n=4096,
                              out_dtype=jnp.float32):
    """x: [N, D]; w1: [D, H]; b1: [H]; w2: [H, OUT]; b2: [OUT] -> [N, OUT]."""
    n, d = x.shape
    h = w1.shape[1]
    out = w2.shape[1]

    # Weights/biases are tiny: one-time cast in the wrapper, resident in VMEM.
    w1b = w1.astype(jnp.bfloat16)
    w2b = w2.astype(jnp.bfloat16)
    b1_2d = b1.reshape(1, h).astype(jnp.float32)
    b2_2d = b2.reshape(1, out).astype(jnp.float32)

    # Row tile: full extent for small N, otherwise tile_n; partial final block
    # is handled by Pallas (no padding, no post-call slice).
    tn = n if n < tile_n else tile_n
    grid = (pl.cdiv(n, tn),)

    cost = pl.CostEstimate(
        flops=2 * n * (d * h + h * out),
        transcendentals=0,
        bytes_accessed=(n * d * x.dtype.itemsize              # x (streamed as-is)
                        + d * h * 2 + h * out * 2             # bf16 weights
                        + (h + out) * 4                       # f32 biases
                        + n * out * jnp.dtype(out_dtype).itemsize),  # output
    )

    return pl.pallas_call(
        _mlp_kernel,
        out_shape=jax.ShapeDtypeStruct((n, out), out_dtype),
        grid=grid,
        in_specs=[
            pl.BlockSpec((tn, d), lambda i: (i, 0)),     # x: streamed per row tile
            pl.BlockSpec((d, h), lambda i: (0, 0)),      # w1: constant -> DMA elided
            pl.BlockSpec((1, h), lambda i: (0, 0)),      # b1
            pl.BlockSpec((h, out), lambda i: (0, 0)),    # w2
            pl.BlockSpec((1, out), lambda i: (0, 0)),    # b2
        ],
        out_specs=pl.BlockSpec((tn, out), lambda i: (i, 0)),
        compiler_params=pltpu.CompilerParams(
            dimension_semantics=("parallel",),           # v7x: shard tiles over 2 TCs
            vmem_limit_bytes=40 * 1024 * 1024,           # headroom over ~12 MiB @ tn=4096
        ),
        cost_estimate=cost,
    )(x, w1b, b1_2d, w2b, b2_2d)


def init_params(key, input_size, hidden_size=64, num_classes=10 + 1):
    """Deterministic PyTorch-Linear-style init (uniform +/- 1/sqrt(fan_in))."""
    k1, k2, k3, k4 = jax.random.split(key, 4)
    bound1 = 1.0 / (input_size ** 0.5)
    bound2 = 1.0 / (hidden_size ** 0.5)
    # stored as [in, out] (transposed relative to torch's [out, in])
    w1 = jax.random.uniform(k1, (input_size, hidden_size), jnp.float32,
                            minval=-bound1, maxval=bound1)
    b1 = jax.random.uniform(k2, (hidden_size,), jnp.float32,
                            minval=-bound1, maxval=bound1)
    w2 = jax.random.uniform(k3, (hidden_size, num_classes), jnp.float32,
                            minval=-bound2, maxval=bound2)
    b2 = jax.random.uniform(k4, (num_classes,), jnp.float32,
                            minval=-bound2, maxval=bound2)
    return w1, b1, w2, b2


if __name__ == "__main__":
    batch, seq, input_size, hidden_size = 2, 8, 32, 64
    num_classes = 10 + 1

    key = jax.random.PRNGKey(0)
    kx, kp = jax.random.split(key)

    # Module input: [batch, seq, input_size]; flatten leading dims for the kernel.
    x = jax.random.normal(kx, (batch, seq, input_size), jnp.float32)
    w1, b1, w2, b2 = init_params(kp, input_size, hidden_size, num_classes)

    x2d = x.reshape(batch * seq, input_size)
    out2d = aspect_classifier_forward(x2d, w1, b1, w2, b2)
    out = out2d.reshape(batch, seq, num_classes)
    jax.block_until_ready(out)

    # Reference in plain JAX with matching bf16-operand / f32-accumulation path.
    xb = x2d.astype(jnp.bfloat16)
    h_ref = jnp.maximum(
        jnp.dot(xb, w1.astype(jnp.bfloat16),
                preferred_element_type=jnp.float32) + b1, 0.0)
    ref = jnp.dot(h_ref.astype(jnp.bfloat16), w2.astype(jnp.bfloat16),
                  preferred_element_type=jnp.float32) + b2
    assert jnp.allclose(out2d, ref, atol=2e-3, rtol=2e-3), "mismatch vs bf16 reference"

    # Loose sanity check against full-f32 math (bf16 rounding tolerance).
    ref_f32 = jnp.maximum(x2d @ w1 + b1, 0.0) @ w2 + b2
    assert jnp.allclose(out2d, ref_f32, atol=5e-2, rtol=5e-2), "mismatch vs f32 reference"

    print("KERNEL_OK")
</pallas_src>

<mosaic_0001>
module attributes {stable_mosaic.version = 11 : i64} {
  func.func @_mlp_kernel(%arg0: i32, %arg1: memref<16x32xf32, #tpu.memory_space<vmem>>, %arg2: memref<32x64xbf16, #tpu.memory_space<vmem>>, %arg3: memref<1x64xf32, #tpu.memory_space<vmem>>, %arg4: memref<64x11xbf16, #tpu.memory_space<vmem>>, %arg5: memref<1x11xf32, #tpu.memory_space<vmem>>, %arg6: memref<16x11xf32, #tpu.memory_space<vmem>>) attributes {dimension_semantics = [#tpu.dimension_semantics<parallel>], iteration_bounds = array<i64: 1>, scalar_prefetch = 0 : i64, scratch_operands = 0 : i64, tpu.core_type = #tpu.core_type<tc>, window_params = [{transform_indices = @transform_0, window_bounds = array<i64: 16, 32>}, {pipeline_mode = #tpu.pipeline_mode<synchronous>, transform_indices = @transform_1, window_bounds = array<i64: 32, 64>}, {pipeline_mode = #tpu.pipeline_mode<synchronous>, transform_indices = @transform_2, window_bounds = array<i64: 1, 64>}, {pipeline_mode = #tpu.pipeline_mode<synchronous>, transform_indices = @transform_3, window_bounds = array<i64: 64, 11>}, {pipeline_mode = #tpu.pipeline_mode<synchronous>, transform_indices = @transform_4, window_bounds = array<i64: 1, 11>}, {transform_indices = @transform_5, window_bounds = array<i64: 16, 11>}]} {
    %c0 = arith.constant 0 : index
    %c0_0 = arith.constant 0 : index
    %0 = vector.load %arg1[%c0, %c0_0] : memref<16x32xf32, #tpu.memory_space<vmem>>, vector<16x32xf32>
    %1 = arith.truncf %0 : vector<16x32xf32> to vector<16x32xbf16>
    %c0_1 = arith.constant 0 : index
    %c0_2 = arith.constant 0 : index
    %2 = vector.load %arg2[%c0_1, %c0_2] : memref<32x64xbf16, #tpu.memory_space<vmem>>, vector<32x64xbf16>
    %cst = arith.constant dense<0.000000e+00> : vector<16x64xf32>
    %3 = tpu.matmul %1, %2, %cst {dimension_numbers = #tpu.dot_dimension_numbers<[1], [0], [0], [1], [0, 0, 1, 1], [], []>} : vector<16x32xbf16>, vector<32x64xbf16>, vector<16x64xf32> -> vector<16x64xf32>
    %c0_3 = arith.constant 0 : index
    %c0_4 = arith.constant 0 : index
    %4 = vector.load %arg3[%c0_3, %c0_4] : memref<1x64xf32, #tpu.memory_space<vmem>>, vector<1x64xf32>
    %5 = vector.broadcast %4 : vector<1x64xf32> to vector<16x64xf32>
    %6 = arith.addf %3, %5 : vector<16x64xf32>
    %cst_5 = arith.constant 0.000000e+00 : f32
    %7 = vector.broadcast %cst_5 : f32 to vector<16x64xf32>
    %8 = arith.maximumf %6, %7 : vector<16x64xf32>
    %9 = arith.truncf %8 : vector<16x64xf32> to vector<16x64xbf16>
    %c0_6 = arith.constant 0 : index
    %c0_7 = arith.constant 0 : index
    %10 = vector.load %arg4[%c0_6, %c0_7] : memref<64x11xbf16, #tpu.memory_space<vmem>>, vector<64x11xbf16>
    %cst_8 = arith.constant dense<0.000000e+00> : vector<16x11xf32>
    %11 = tpu.matmul %9, %10, %cst_8 {dimension_numbers = #tpu.dot_dimension_numbers<[1], [0], [0], [1], [0, 0, 1, 1], [], []>} : vector<16x64xbf16>, vector<64x11xbf16>, vector<16x11xf32> -> vector<16x11xf32>
    %c0_9 = arith.constant 0 : index
    %c0_10 = arith.constant 0 : index
    %12 = vector.load %arg5[%c0_9, %c0_10] : memref<1x11xf32, #tpu.memory_space<vmem>>, vector<1x11xf32>
    %13 = vector.broadcast %12 : vector<1x11xf32> to vector<16x11xf32>
    %14 = arith.addf %11, %13 : vector<16x11xf32>
    %c0_11 = arith.constant 0 : index
    %c0_12 = arith.constant 0 : index
    %15 = vector.load %arg6[%c0_11, %c0_12] : memref<16x11xf32, #tpu.memory_space<vmem>>, vector<16x11xf32>
    tpu.vector_store %arg6[%c0_11, %c0_12], %14 {strides = array<i32>} : memref<16x11xf32, #tpu.memory_space<vmem>>, vector<16x11xf32>,
    return
  }
  func.func @transform_0(%arg0: i32) -> (i32, i32) {
    %c0_i32 = arith.constant 0 : i32
    %c0_i32_0 = arith.constant 0 : i32
    return %arg0, %c0_i32 : i32, i32
  }
  func.func @transform_1(%arg0: i32) -> (i32, i32) {
    %c0_i32 = arith.constant 0 : i32
    %c0_i32_0 = arith.constant 0 : i32
    %c0_i32_1 = arith.constant 0 : i32
    return %c0_i32, %c0_i32_0 : i32, i32
  }
  func.func @transform_2(%arg0: i32) -> (i32, i32) {
    %c0_i32 = arith.constant 0 : i32
    %c0_i32_0 = arith.constant 0 : i32
    %c0_i32_1 = arith.constant 0 : i32
    return %c0_i32, %c0_i32_0 : i32, i32
  }
  func.func @transform_3(%arg0: i32) -> (i32, i32) {
    %c0_i32 = arith.constant 0 : i32
    %c0_i32_0 = arith.constant 0 : i32
    %c0_i32_1 = arith.constant 0 : i32
    return %c0_i32, %c0_i32_0 : i32, i32
  }
  func.func @transform_4(%arg0: i32) -> (i32, i32) {
    %c0_i32 = arith.constant 0 : i32
    %c0_i32_0 = arith.constant 0 : i32
    %c0_i32_1 = arith.constant 0 : i32
    return %c0_i32, %c0_i32_0 : i32, i32
  }
  func.func @transform_5(%arg0: i32) -> (i32, i32) {
    %c0_i32 = arith.constant 0 : i32
    %c0_i32_0 = arith.constant 0 : i32
    return %arg0, %c0_i32 : i32, i32
  }
}

</mosaic_0001>

<llo_original>
// kernel: tpu_custom_call.1
$region0: #{tpu_custom_call.1}
  #allocation0 [shape = 'u32[]', space=smem, size = 0x4, offset = 0x4, fixed_abs, tag = 'smem constant byte address 0x4 - core index']
  #allocation1 [shape = 'u32[72,128]{1,0:T(1,128)}', space=vmem, size = 0x9000, scoped, tag = 'internal scratch']
  %s0 = inlined_call_operand.vmem [shape: f32[16,32], index: 0, kind: input, shape index: {}]
  %s1 = inlined_call_operand.vmem [shape: bf16[32,64], index: 1, kind: input, shape index: {}]
  %s2 = inlined_call_operand.vmem [shape: f32[1,64], index: 2, kind: input, shape index: {}]
  %s3 = inlined_call_operand.vmem [shape: bf16[64,11], index: 3, kind: input, shape index: {}]
  %s4 = inlined_call_operand.vmem [shape: f32[1,11], index: 4, kind: input, shape index: {}]
  %s5 = inlined_call_operand.hbm [shape: f32[16,11], index: 5, kind: output, shape index: {}]
  %s6 = sld [smem:[#allocation0]]
  $region30: #{tpu_custom_call.1} parent=0
    _
  %s8 = ssub.s32 1, %s6
  %s9 = scalar_select 0, %s8, %s6
  $region1: #{tpu_custom_call.1} parent=0
    #allocation2 [shape = 'u8[8192]{0}', space=vmem, size = 0x2000, scoped, tag = 'output window, operand 0, single buffered']
    #allocation3 [shape = 's32[1]{0}', space=sflag, size = 0x4, scoped, tag = 'scoped memory for tpu_custom_call.1']
    %10 = vsyncpa [#allocation3], 0
    // Predicated region
    $region2: #{tpu_custom_call.1} parent=1 // pred_check
      _
    $region3: #{tpu_custom_call.1} parent=1 // pred_check_branch
      %12 = sbr.rel (0) target = $region5
    $region4: #{tpu_custom_call.1} parent=1 // pred_region
      _
    $region5: #{tpu_custom_call.1} parent=1 // pred_fallthru
      _
    // Predicated region
    $region6: #{tpu_custom_call.1} parent=1 // pred_check
      _
    $region7: #{tpu_custom_call.1} parent=1 // pred_check_branch
      %14 = sbr.rel (0) target = $region9
    $region8: #{tpu_custom_call.1} parent=1 // pred_region
      _
    $region9: #{tpu_custom_call.1} parent=1 // pred_fallthru
      _
    // Predicated region
    $region10: #{tpu_custom_call.1} parent=1 // pred_check
      _
    $region11: #{tpu_custom_call.1} parent=1 // pred_check_branch
      %16 = sbr.rel (0) target = $region13
    $region12: #{tpu_custom_call.1} parent=1 // pred_region
      _
    $region13: #{tpu_custom_call.1} parent=1 // pred_fallthru
      _
    // Predicated region
    $region14: #{tpu_custom_call.1} parent=1 // pred_check
      _
    $region15: #{tpu_custom_call.1} parent=1 // pred_check_branch
      %18 = sbr.rel (0) target = $region17
    $region16: #{tpu_custom_call.1} parent=1 // pred_region
      _
    $region17: #{tpu_custom_call.1} parent=1 // pred_fallthru
      _
    // Predicated region
    $region18: #{tpu_custom_call.1} parent=1 // pred_check
      _
    $region19: #{tpu_custom_call.1} parent=1 // pred_check_branch
      %20 = sbr.rel (0) target = $region21
    $region20: #{tpu_custom_call.1} parent=1 // pred_region
      _
    $region21: #{tpu_custom_call.1} parent=1 // pred_fallthru
      _
    %v22 = vld [vmem:[%s0] sm:$0xff]
    %v23 = vld [vmem:[%s0 + $0x8] sm:$0xff]
    %v24 = vpack.c.bf16 %v23, %v22
    %v25 = vld [vmem:[%s1] sm:$0xf]
    %v26 = vld [vmem:[%s1 + $0x4] sm:$0xf]
    %v27 = vld [vmem:[%s1 + $0x8] sm:$0xf]
    %v28 = vld [vmem:[%s1 + $0xc] sm:$0xf]
    %v29 = vld [vmem:[%s2] sm:$0x1]
    %v31 = vperm.slane %v29, 0
    %v37 = vunpack.c.l.b16 %v25
    %v38 = vunpack.c.l.b16 %v26
    %v39 = vunpack.c.l.b16 %v27
    %v40 = vunpack.c.l.b16 %v28
    %v41 = vpack.c.b16 %v38, %v37
    %v42 = vpack.c.b16 %v40, %v39
    %vm45 = vcmask 261120
    %v47 = vsel %vm45, %v24, 0
    %49 = vmatpush.bf16.msra.mxu0 0
    %50 = vmatpush.bf16.msra.mxu0 0
    %51 = vmatpush.bf16.msra.mxu0 0
    %52 = vmatpush.bf16.msra.mxu0 0
    %53 = vmatpush.bf16.msra.mxu0 0
    %54 = vmatpush.bf16.msra.mxu0 0
    %55 = vmatpush.bf16.msra.mxu0 %v42
    %56 = vmatpush.bf16.msra.mxu0 %v41
    %57 = vmatmul.bf16.gmra.mxu0 %v47
    %v58 = vpop.f32.mrf.mxu0
    %v59 = vadd.f32 %v31, %v58
    %v60 = vpop.f32.mrf.mxu0
    %v61 = vadd.f32 %v31, %v60
    %62 = vdwg.mxu0
    %v63 = vmax.f32 %v59, 0.0
    %v64 = vmax.f32 %v61, 0.0
    %v65 = vpack.c.bf16 %v64, %v63
    %v66 = vld [vmem:[%s3] sm:$0xf]
    %v67 = vld [vmem:[%s3 + $0x4] sm:$0xf]
    %v68 = vld [vmem:[%s3 + $0x8] sm:$0xf]
    %v69 = vld [vmem:[%s3 + $0xc] sm:$0xf]
    %v70 = vld [vmem:[%s3 + $0x10] sm:$0xf]
    %v71 = vld [vmem:[%s3 + $0x14] sm:$0xf]
    %v72 = vld [vmem:[%s3 + $0x18] sm:$0xf]
    %v73 = vld [vmem:[%s3 + $0x1c] sm:$0xf]
    %v74 = vld [vmem:[%s4] sm:$0x1]
    %v76 = vperm.slane %v74, 0
    %v86 = vunpack.c.l.b16 %v66
    %v87 = vunpack.c.l.b16 %v67
    %v88 = vunpack.c.l.b16 %v68
    %v89 = vunpack.c.l.b16 %v69
    %v90 = vunpack.c.l.b16 %v70
    %v91 = vunpack.c.l.b16 %v71
    %v92 = vunpack.c.l.b16 %v72
    %v93 = vunpack.c.l.b16 %v73
    %v94 = vpack.c.b16 %v87, %v86
    %v95 = vpack.c.b16 %v89, %v88
    %v96 = vpack.c.b16 %v91, %v90
    %v97 = vpack.c.b16 %v93, %v92
    %vm102 = vcmask 523264
    %v104 = vsel %vm102, %v65, 0
    %106 = vmatpush.bf16.msra.mxu0 0
    %107 = vmatpush.bf16.msra.mxu0 0
    %108 = vmatpush.bf16.msra.mxu0 0
    %109 = vmatpush.bf16.msra.mxu0 0
    %110 = vmatpush.bf16.msra.mxu0 %v97
    %111 = vmatpush.bf16.msra.mxu0 %v96
    %112 = vmatpush.bf16.msra.mxu0 %v95
    %113 = vmatpush.bf16.msra.mxu0 %v94
    %114 = vmatmul.bf16.gmra.mxu0 %v104
    %v115 = vpop.f32.mrf.mxu0
    %v116 = vadd.f32 %v76, %v115
    %v117 = vpop.f32.mrf.mxu0
    %v118 = vadd.f32 %v76, %v117
    %119 = vdwg.mxu0
    %vm120 = vcmask 89088
    %121 = vst.msk [vmem:[#allocation2] sm:$0xff] %vm120, %v116
    %122 = vst.msk [vmem:[#allocation2 + $0x8] sm:$0xff] %vm120, %v118
    // Predicated region
    $region22: #{tpu_custom_call.1} parent=1 // pred_check
      _
    $region23: #{tpu_custom_call.1} parent=1 // pred_check_branch
      %124 = sbr.rel (0) target = $region25
    $region24: #{tpu_custom_call.1} parent=1 // pred_region
      %126 = vsyncadd [#allocation3], 0
      %s127 = sshll.u32 [#allocation2], 4
      %s128 = int_to_ptr.vmem [resolvable:$true] %s127
      %s129 = sshll.u32 %s5, 4
      %s130 = int_to_ptr.hbm [resolvable:$true] %s129
      %135 = dma.vmem_to_hbm [thread:$0]  %s128, 256, %s130, [#allocation3], 128, 128, 8
    $region25: #{tpu_custom_call.1} parent=1 // pred_fallthru
      _
    // Predicated region
    $region26: #{tpu_custom_call.1} parent=1 // pred_check
      _
    $region27: #{tpu_custom_call.1} parent=1 // pred_check_branch
      %137 = sbr.rel (0) target = $region29
    $region28: #{tpu_custom_call.1} parent=1 // pred_region
      %139 = dma.done [#allocation3], 256
    $region29: #{tpu_custom_call.1} parent=1 // pred_fallthru
      _
    %140 = vsyncpa [#allocation3], 1

</llo_original>
